<compile_context>
chip_gen: v5e
topology: v5e:2x2
jax: 0.10.0
libtpu: 0.0.40
codegen_flags: <defaults>
</compile_context>

<pallas_src>
import functools

import jax
import jax.numpy as jnp
from jax.experimental import pallas as pl
from jax.experimental.pallas import tpu as pltpu

F32 = jnp.float32


# ---------------------------------------------------------------------------
# BlockSpec helper: full-array block on a (1,) grid.
# ---------------------------------------------------------------------------
def _spec(shape):
    n = len(shape)
    return pl.BlockSpec(shape, lambda i, _n=n: (0,) * _n)


# ---------------------------------------------------------------------------
# Kernel 1: RGB -> HSV + grayscale "depth" + boundary-aware edge prior (fused)
# ---------------------------------------------------------------------------
def _hsv_gray_edge_kernel(img_ref, hsv_ref, gray_ref, edge_ref, *, eps):
    r = img_ref[0]
    g = img_ref[1]
    b = img_ref[2]
    maxc = jnp.maximum(jnp.maximum(r, g), b)
    minc = jnp.minimum(jnp.minimum(r, g), b)
    v = maxc
    delta = maxc - minc
    s = jnp.where(maxc > 0.0, delta / (maxc + 1e-8), 0.0)
    safe_delta = jnp.where(delta > 0.0, delta, 1.0)
    hr = (g - b) / safe_delta
    hr = jnp.where(hr < 0.0, hr + 6.0, hr)            # ((g-b)/delta) mod 6
    hg = (b - r) / safe_delta + 2.0
    hb = (r - g) / safe_delta + 4.0
    h = jnp.where(maxc == r, hr, jnp.where(maxc == g, hg, hb))
    h = jnp.where(delta > 0.0, h / 6.0, 0.0)
    hsv_ref[0] = h
    hsv_ref[1] = s
    hsv_ref[2] = v

    gray = 0.299 * r + 0.587 * g + 0.114 * b
    gray_ref[0] = gray

    # TODO(synk): exact gradient operator of I.BoundaryAwarePrior is not
    # public; forward-difference magnitude thresholded at eps is used.
    H, W = gray.shape
    col = jax.lax.broadcasted_iota(jnp.int32, (H, W), 1)
    row = jax.lax.broadcasted_iota(jnp.int32, (H, W), 0)
    dx = pltpu.roll(gray, W - 1, axis=1) - gray        # gray[:, j+1] - gray[:, j]
    dx = jnp.where(col == W - 1, 0.0, dx)
    dy = pltpu.roll(gray, H - 1, axis=0) - gray        # gray[i+1, :] - gray[i, :]
    dy = jnp.where(row == H - 1, 0.0, dy)
    mag = jnp.sqrt(dx * dx + dy * dy)
    edge_ref[0] = (mag > eps).astype(F32)


def hsv_gray_edge(img_chw, eps):
    # TODO(synk): at very large H*W this full-frame block should be row-tiled
    # with a 1-row halo for the vertical difference (not needed at demo size).
    _, H, W = img_chw.shape
    return pl.pallas_call(
        functools.partial(_hsv_gray_edge_kernel, eps=eps),
        out_shape=(jax.ShapeDtypeStruct((3, H, W), F32),
                   jax.ShapeDtypeStruct((1, H, W), F32),
                   jax.ShapeDtypeStruct((1, H, W), F32)),
        grid=(1,),
        in_specs=[_spec((3, H, W))],
        out_specs=(_spec((3, H, W)), _spec((1, H, W)), _spec((1, H, W))),
        compiler_params=pltpu.CompilerParams(dimension_semantics=("arbitrary",)),
    )(img_chw)


# ---------------------------------------------------------------------------
# Kernel 2: fused INR encoders + decoder + fusion + guided-filter coefficients
# All data is pixels-on-lanes: features/rows on sublanes, N=ds*ds pixels on
# lanes, so the decoder output and every store are lane-dense.
# ---------------------------------------------------------------------------
def _inr_fused_kernel(xT_ref, w0T_ref, b0T_ref, w1T_ref, b1T_ref, wd_ref,
                      bd_ref, v_ref, d_ref, boxT_ref, nbox_ref, out_ref,
                      *, omega, gamma, gf_eps):
    # Packed SIREN encoders: one MXU matmul per layer for all 6 encoders.
    h = jnp.sin(omega * (jnp.dot(w0T_ref[...], xT_ref[...],
                                 preferred_element_type=F32) + b0T_ref[...]))
    h = jnp.sin(omega * (jnp.dot(w1T_ref[...], h,
                                 preferred_element_type=F32) + b1T_ref[...]))
    # Decoder (out_layers = 1): weighted sublane reduction -> (1, N), lane dense.
    illu_res = jnp.sum(wd_ref[...] * h, axis=0, keepdims=True) + bd_ref[...]

    img = v_ref[...]                                   # (1, N) image_lr (V channel)
    d = d_ref[...]                                     # (1, N) depth_lr
    d_max = jnp.max(d)
    illu = img + illu_res
    # epsilon guard: all-zero depth would otherwise produce NaN.
    res2 = illu_res * (1.0 + gamma * (1.0 - d / jnp.maximum(d_max, 1e-8)))
    illu2 = img + res2
    enh = img / (illu2 + 1e-8)

    # FastGuidedFilter low-res coefficients; the truncated box filter of all
    # four signals is one (4, N) @ (N, N) matmul.
    stack = jnp.concatenate([img, enh, img * enh, img * img], axis=0)   # (4, N)
    box = jnp.dot(stack, boxT_ref[...], preferred_element_type=F32)     # (4, N)
    n = nbox_ref[...]                                                   # (1, N)
    mean_x = box[0:1] / n
    mean_y = box[1:2] / n
    mean_xy = box[2:3] / n
    mean_xx = box[3:4] / n
    cov = mean_xy - mean_x * mean_y
    var = mean_xx - mean_x * mean_x
    A = cov / (var + gf_eps)
    B = mean_y - A * mean_x

    out_ref[...] = jnp.concatenate(
        [illu_res, illu, res2, illu2, enh, A, B], axis=0)               # (7, N)


def inr_fused(xT, w0T, b0T, w1T, b1T, wd, bd, v_flat, d_flat, boxT, n_box,
              omega, gamma, gf_eps):
    N = xT.shape[1]
    return pl.pallas_call(
        functools.partial(_inr_fused_kernel, omega=omega, gamma=gamma,
                          gf_eps=gf_eps),
        out_shape=jax.ShapeDtypeStruct((7, N), F32),
        grid=(1,),
        in_specs=[_spec(xT.shape), _spec(w0T.shape), _spec(b0T.shape),
                  _spec(w1T.shape), _spec(b1T.shape), _spec(wd.shape),
                  _spec(bd.shape), _spec(v_flat.shape), _spec(d_flat.shape),
                  _spec(boxT.shape), _spec(n_box.shape)],
        out_specs=_spec((7, N)),
        compiler_params=pltpu.CompilerParams(dimension_semantics=("arbitrary",)),
    )(xT, w0T, b0T, w1T, b1T, wd, bd, v_flat, d_flat, boxT, n_box)


# ---------------------------------------------------------------------------
# Kernel 3: bilinear upsample of A/b (as matmuls) + V replacement + HSV->RGB,
# row-tiled over the image height.
# ---------------------------------------------------------------------------
def _final_compose_kernel(hsv_ref, a_ref, b_ref, wy_ref, wxT_ref,
                          rgb_ref, v_ref):
    wy = wy_ref[...]                                    # (TH, ds)
    a_hr = jnp.dot(jnp.dot(wy, a_ref[...], preferred_element_type=F32),
                   wxT_ref[...], preferred_element_type=F32)   # (TH, W)
    b_hr = jnp.dot(jnp.dot(wy, b_ref[...], preferred_element_type=F32),
                   wxT_ref[...], preferred_element_type=F32)

    h = hsv_ref[0]
    s = hsv_ref[1]
    v = hsv_ref[2]
    ev = jnp.clip(a_hr * v + b_hr, 0.0, 1.0)            # enhanced V (clipped)

    h6 = h * 6.0
    i = jnp.clip(jnp.floor(h6), 0.0, 5.0)
    f = h6 - i
    p = ev * (1.0 - s)
    q = ev * (1.0 - f * s)
    t = ev * (1.0 - (1.0 - f) * s)
    r = jnp.where(i == 0.0, ev, jnp.where(i == 1.0, q, jnp.where(i == 2.0, p,
        jnp.where(i == 3.0, p, jnp.where(i == 4.0, t, ev)))))
    g = jnp.where(i == 0.0, t, jnp.where(i == 1.0, ev, jnp.where(i == 2.0, ev,
        jnp.where(i == 3.0, q, p))))
    bl = jnp.where(i == 0.0, p, jnp.where(i == 1.0, p, jnp.where(i == 2.0, t,
        jnp.where(i == 3.0, ev, jnp.where(i == 4.0, ev, q)))))
    rgb_ref[0] = r
    rgb_ref[1] = g
    rgb_ref[2] = bl
    v_ref[0] = ev


def _choose_row_tile(H):
    cap = min(128, (H // 8) * 8)
    for c in range(cap, 7, -8):
        if H % c == 0:
            return c
    return H


def final_compose(hsv, a_lr, b_lr, wy, wxT):
    _, H, W = hsv.shape
    ds = a_lr.shape[0]
    th = _choose_row_tile(H)
    grid = (H // th,)
    return pl.pallas_call(
        _final_compose_kernel,
        out_shape=(jax.ShapeDtypeStruct((3, H, W), F32),
                   jax.ShapeDtypeStruct((1, H, W), F32)),
        grid=grid,
        in_specs=[pl.BlockSpec((3, th, W), lambda t: (0, t, 0)),
                  pl.BlockSpec((ds, ds), lambda t: (0, 0)),
                  pl.BlockSpec((ds, ds), lambda t: (0, 0)),
                  pl.BlockSpec((th, ds), lambda t: (t, 0)),
                  pl.BlockSpec((ds, W), lambda t: (0, 0))],
        out_specs=(pl.BlockSpec((3, th, W), lambda t: (0, t, 0)),
                   pl.BlockSpec((1, th, W), lambda t: (0, t, 0))),
        compiler_params=pltpu.CompilerParams(dimension_semantics=("parallel",)),
    )(hsv, a_lr, b_lr, wy, wxT)


# ---------------------------------------------------------------------------
# JAX glue: resize, patch extraction, coords, interpolation/box matrices, init
# ---------------------------------------------------------------------------
def resize2d(x, shape, method="bicubic"):
    # TODO(synk): torch F.interpolate bicubic (align_corners=False) uses a
    # slightly different border handling than jax.image.resize.
    return jax.image.resize(x, shape, method=method, antialias=False)


def _extract_patches_T(x, win):
    # (win*win, ds*ds): row o = flattened, zero-padded, o-shifted image.
    # TODO(synk): could be built in-kernel with pltpu.roll; kept wrapper-side
    # at ds=16 where the XLA slices are negligible.
    ds = x.shape[0]
    p = win // 2
    xp = jnp.pad(x, ((p, p), (p, p)))
    rows = [xp[i:i + ds, j:j + ds].reshape(ds * ds)
            for i in range(win) for j in range(win)]
    return jnp.stack(rows, axis=0)


def _make_coords_T(ds):
    lin = jnp.linspace(-1.0, 1.0, ds, dtype=F32)
    yy, xx = jnp.meshgrid(lin, lin, indexing="ij")
    return jnp.stack([yy.reshape(-1), xx.reshape(-1)], axis=0)    # (2, ds*ds)


def _bilinear_matrix(out_size, in_size):
    # torch F.interpolate(mode="bilinear", align_corners=False) as (out, in).
    scale = in_size / out_size
    dst = jnp.arange(out_size, dtype=F32)
    src = jnp.maximum((dst + 0.5) * scale - 0.5, 0.0)
    i0f = jnp.floor(src)
    lam = src - i0f
    i0 = jnp.minimum(i0f.astype(jnp.int32), in_size - 1)
    i1 = jnp.minimum(i0 + 1, in_size - 1)
    m0 = jax.nn.one_hot(i0, in_size, dtype=F32) * (1.0 - lam)[:, None]
    m1 = jax.nn.one_hot(i1, in_size, dtype=F32) * lam[:, None]
    return m0 + m1


def _box_matrix(ds, r):
    # Symmetric (N, N) truncated box-sum matrix over the flattened ds x ds grid
    # (same edge handling as FastGuidedFilter's cumsum boxfilter), plus counts.
    idx = jnp.arange(ds * ds)
    ii = idx // ds
    jj = idx % ds
    di = jnp.abs(ii[:, None] - ii[None, :])
    dj = jnp.abs(jj[:, None] - jj[None, :])
    B = ((di <= r) & (dj <= r)).astype(F32)
    n = jnp.sum(B, axis=1).reshape(1, ds * ds)
    return B, n


def init_siren2(key, in_dim, mid, omega):
    k0, k1, k2, k3 = jax.random.split(key, 4)
    b_first = 1.0 / in_dim
    w0 = jax.random.uniform(k0, (in_dim, mid), F32, -b_first, b_first)
    b0 = jax.random.uniform(k1, (1, mid), F32, -b_first, b_first)
    b_hid = (6.0 / mid) ** 0.5 / omega
    w1 = jax.random.uniform(k2, (mid, mid), F32, -b_hid, b_hid)
    b1 = jax.random.uniform(k3, (1, mid), F32, -b_hid, b_hid)
    return w0, b0, w1, b1


# ---------------------------------------------------------------------------
# Full forward
# ---------------------------------------------------------------------------
def mlp_hsv_d_forward(image,
                      window_size=(3, 5, 7),
                      hidden_channels=32,
                      down_size=16,
                      omega_0=30.0,
                      depth_gamma=0.7,
                      gf_radius=3,
                      gf_eps=1e-8,        # FastGuidedFilter regularizer
                      edge_threshold=0.05,
                      param_key=None):
    if param_key is None:
        param_key = jax.random.PRNGKey(42)
    B, C, H, W = image.shape
    assert B == 1 and C == 3
    mid = hidden_channels // 2
    num_scales = len(window_size)
    ds = down_size
    N = ds * ds

    # --- color / depth / edge priors (single fused Pallas kernel) ---
    hsv, gray, edge = hsv_gray_edge(image[0], edge_threshold)
    image_v = hsv[2]                                   # V = max(R,G,B)

    # --- downsample to the INR resolution ---
    v_lr = resize2d(image_v, (ds, ds))
    depth_lr = resize2d(gray[0], (ds, ds))
    edge_lr = resize2d(edge[0], (ds, ds))

    # --- deterministic SIREN parameter init ---
    keys = jax.random.split(param_key, num_scales + 4)
    enc_in = [w * w for w in window_size] + [window_size[-1] ** 2,
                                             window_size[-1] ** 2, 2]
    enc_params = [init_siren2(keys[i], enc_in[i], mid, omega_0)
                  for i in range(len(enc_in))]
    dec_in = mid * (num_scales + 3)
    kw, kb = jax.random.split(keys[num_scales + 3])
    dec_bound = (6.0 / dec_in) ** 0.5 / omega_0
    w_dec = jax.random.uniform(kw, (dec_in, 1), F32, -dec_bound, dec_bound)
    b_dec = jax.random.uniform(kb, (1, 1), F32, -dec_bound, dec_bound)

    # --- pack all encoders into block-diagonal weights (transposed layout) ---
    w0T = jax.scipy.linalg.block_diag(*[p[0].T for p in enc_params])  # (F, K)
    b0T = jnp.concatenate([p[1].T for p in enc_params], axis=0)       # (F, 1)
    w1T = jax.scipy.linalg.block_diag(*[p[2].T for p in enc_params])  # (F, F)
    b1T = jnp.concatenate([p[3].T for p in enc_params], axis=0)       # (F, 1)

    K_total = sum(enc_in)
    K_pad = ((K_total + 127) // 128) * 128
    xT_blocks = [_extract_patches_T(v_lr, window_size[i]) for i in range(num_scales)]
    xT_blocks += [_extract_patches_T(depth_lr, window_size[-1]),
                  _extract_patches_T(edge_lr, window_size[-1]),
                  _make_coords_T(ds)]
    xT = jnp.concatenate(xT_blocks, axis=0)                           # (K, N)
    xT = jnp.pad(xT, ((0, K_pad - K_total), (0, 0)))
    w0T = jnp.pad(w0T, ((0, 0), (0, K_pad - K_total)))

    boxT, n_box = _box_matrix(ds, gf_radius)

    # --- ONE fused kernel for the whole low-res stage ---
    lowres = inr_fused(xT, w0T, b0T, w1T, b1T, w_dec, b_dec,
                       v_lr.reshape(1, N), depth_lr.reshape(1, N),
                       boxT, n_box, omega_0, depth_gamma, gf_eps)
    illu_res_lr = lowres[0].reshape(ds, ds)
    illu_lr = lowres[1].reshape(ds, ds)
    illu_res_lr2 = lowres[2].reshape(ds, ds)
    illu_lr2 = lowres[3].reshape(ds, ds)
    enhanced_lr = lowres[4].reshape(ds, ds)
    a_lr = lowres[5].reshape(ds, ds)
    b_lr = lowres[6].reshape(ds, ds)

    # --- guided-filter upsample + V replacement + HSV->RGB (row-tiled) ---
    wy = _bilinear_matrix(H, ds)
    wxT = _bilinear_matrix(W, ds).T
    enhanced_rgb, enhanced_v = final_compose(hsv, a_lr, b_lr, wy, wxT)

    return {
        "image": image,
        "depth": gray[None],
        "edge": edge[None],
        "image_lr": v_lr.reshape(1, 1, ds, ds),
        "depth_lr": depth_lr.reshape(1, 1, ds, ds),
        "edge_lr": edge_lr.reshape(1, 1, ds, ds),
        "illu_res_lr": illu_res_lr.reshape(1, 1, ds, ds),
        "illu_res_lr2": illu_res_lr2.reshape(1, 1, ds, ds),
        "illu_lr": illu_lr.reshape(1, 1, ds, ds),
        "illu_lr2": illu_lr2.reshape(1, 1, ds, ds),
        "enhanced_lr": enhanced_lr.reshape(1, 1, ds, ds),
        "enhanced_v": enhanced_v[None],
        "enhanced": enhanced_rgb[None],
    }


if __name__ == "__main__":
    key = jax.random.PRNGKey(0)
    image = jax.random.uniform(key, (1, 3, 32, 32), dtype=F32)
    out = mlp_hsv_d_forward(image, window_size=(3, 5, 7), hidden_channels=32,
                            down_size=16)
    jax.block_until_ready(out)
    assert out["enhanced"].shape == (1, 3, 32, 32)
    assert out["illu_res_lr"].shape == (1, 1, 16, 16)
    assert out["enhanced_lr"].shape == (1, 1, 16, 16)
    print("KERNEL_OK")
</pallas_src>

<mosaic_0001>
module attributes {stable_mosaic.version = 11 : i64} {
  func.func @_hsv_gray_edge_kernel(%arg0: i32, %arg1: memref<3x32x32xf32, #tpu.memory_space<vmem>>, %arg2: memref<3x32x32xf32, #tpu.memory_space<vmem>>, %arg3: memref<1x32x32xf32, #tpu.memory_space<vmem>>, %arg4: memref<1x32x32xf32, #tpu.memory_space<vmem>>) attributes {dimension_semantics = [#tpu.dimension_semantics<arbitrary>], iteration_bounds = array<i64: 1>, scalar_prefetch = 0 : i64, scratch_operands = 0 : i64, tpu.core_type = #tpu.core_type<tc>, window_params = [{pipeline_mode = #tpu.pipeline_mode<synchronous>, transform_indices = @transform_0, window_bounds = array<i64: 3, 32, 32>}, {pipeline_mode = #tpu.pipeline_mode<synchronous>, transform_indices = @transform_1, window_bounds = array<i64: 3, 32, 32>}, {pipeline_mode = #tpu.pipeline_mode<synchronous>, transform_indices = @transform_2, window_bounds = array<i64: 1, 32, 32>}, {pipeline_mode = #tpu.pipeline_mode<synchronous>, transform_indices = @transform_3, window_bounds = array<i64: 1, 32, 32>}]} {
    %c0 = arith.constant 0 : index
    %c0_0 = arith.constant 0 : index
    %c0_1 = arith.constant 0 : index
    %0 = vector.load %arg1[%c0, %c0_0, %c0_1] : memref<3x32x32xf32, #tpu.memory_space<vmem>>, vector<1x32x32xf32>
    %1 = vector.shape_cast %0 : vector<1x32x32xf32> to vector<32x32xf32>
    %c1 = arith.constant 1 : index
    %c0_2 = arith.constant 0 : index
    %c0_3 = arith.constant 0 : index
    %2 = vector.load %arg1[%c1, %c0_2, %c0_3] : memref<3x32x32xf32, #tpu.memory_space<vmem>>, vector<1x32x32xf32>
    %3 = vector.shape_cast %2 : vector<1x32x32xf32> to vector<32x32xf32>
    %c2 = arith.constant 2 : index
    %c0_4 = arith.constant 0 : index
    %c0_5 = arith.constant 0 : index
    %4 = vector.load %arg1[%c2, %c0_4, %c0_5] : memref<3x32x32xf32, #tpu.memory_space<vmem>>, vector<1x32x32xf32>
    %5 = vector.shape_cast %4 : vector<1x32x32xf32> to vector<32x32xf32>
    %6 = arith.maximumf %1, %3 : vector<32x32xf32>
    %7 = arith.maximumf %6, %5 : vector<32x32xf32>
    %8 = arith.minimumf %1, %3 : vector<32x32xf32>
    %9 = arith.minimumf %8, %5 : vector<32x32xf32>
    %10 = arith.subf %7, %9 : vector<32x32xf32>
    %cst = arith.constant 0.000000e+00 : f32
    %11 = vector.broadcast %cst : f32 to vector<32x32xf32>
    %12 = arith.cmpf ogt, %7, %11 : vector<32x32xf32>
    %cst_6 = arith.constant 9.99999993E-9 : f32
    %13 = vector.broadcast %cst_6 : f32 to vector<32x32xf32>
    %14 = arith.addf %7, %13 : vector<32x32xf32>
    %15 = arith.divf %10, %14 : vector<32x32xf32>
    %cst_7 = arith.constant 0.000000e+00 : f32
    %16 = vector.broadcast %cst_7 : f32 to vector<32x32xf32>
    %17 = arith.select %12, %15, %16 : vector<32x32xi1>, vector<32x32xf32>
    %cst_8 = arith.constant 0.000000e+00 : f32
    %18 = vector.broadcast %cst_8 : f32 to vector<32x32xf32>
    %19 = arith.cmpf ogt, %10, %18 : vector<32x32xf32>
    %cst_9 = arith.constant 1.000000e+00 : f32
    %20 = vector.broadcast %cst_9 : f32 to vector<32x32xf32>
    %21 = arith.select %19, %10, %20 : vector<32x32xi1>, vector<32x32xf32>
    %22 = arith.subf %3, %5 : vector<32x32xf32>
    %23 = arith.divf %22, %21 : vector<32x32xf32>
    %cst_10 = arith.constant 0.000000e+00 : f32
    %24 = vector.broadcast %cst_10 : f32 to vector<32x32xf32>
    %25 = arith.cmpf olt, %23, %24 : vector<32x32xf32>
    %cst_11 = arith.constant 6.000000e+00 : f32
    %26 = vector.broadcast %cst_11 : f32 to vector<32x32xf32>
    %27 = arith.addf %23, %26 : vector<32x32xf32>
    %28 = arith.select %25, %27, %23 : vector<32x32xi1>, vector<32x32xf32>
    %29 = arith.subf %5, %1 : vector<32x32xf32>
    %30 = arith.divf %29, %21 : vector<32x32xf32>
    %cst_12 = arith.constant 2.000000e+00 : f32
    %31 = vector.broadcast %cst_12 : f32 to vector<32x32xf32>
    %32 = arith.addf %30, %31 : vector<32x32xf32>
    %33 = arith.subf %1, %3 : vector<32x32xf32>
    %34 = arith.divf %33, %21 : vector<32x32xf32>
    %cst_13 = arith.constant 4.000000e+00 : f32
    %35 = vector.broadcast %cst_13 : f32 to vector<32x32xf32>
    %36 = arith.addf %34, %35 : vector<32x32xf32>
    %37 = arith.cmpf oeq, %7, %1 : vector<32x32xf32>
    %38 = arith.cmpf oeq, %7, %3 : vector<32x32xf32>
    %39 = arith.select %38, %32, %36 : vector<32x32xi1>, vector<32x32xf32>
    %40 = arith.select %37, %28, %39 : vector<32x32xi1>, vector<32x32xf32>
    %cst_14 = arith.constant 0.000000e+00 : f32
    %41 = vector.broadcast %cst_14 : f32 to vector<32x32xf32>
    %42 = arith.cmpf ogt, %10, %41 : vector<32x32xf32>
    %cst_15 = arith.constant 6.000000e+00 : f32
    %43 = vector.broadcast %cst_15 : f32 to vector<32x32xf32>
    %44 = arith.divf %40, %43 : vector<32x32xf32>
    %cst_16 = arith.constant 0.000000e+00 : f32
    %45 = vector.broadcast %cst_16 : f32 to vector<32x32xf32>
    %46 = arith.select %42, %44, %45 : vector<32x32xi1>, vector<32x32xf32>
    %c0_17 = arith.constant 0 : index
    %c0_18 = arith.constant 0 : index
    %c0_19 = arith.constant 0 : index
    %47 = vector.load %arg2[%c0_17, %c0_18, %c0_19] : memref<3x32x32xf32, #tpu.memory_space<vmem>>, vector<1x32x32xf32>
    %48 = vector.shape_cast %47 : vector<1x32x32xf32> to vector<32x32xf32>
    %49 = vector.shape_cast %46 : vector<32x32xf32> to vector<1x32x32xf32>
    tpu.vector_store %arg2[%c0_17, %c0_18, %c0_19], %49 {strides = array<i32>} : memref<3x32x32xf32, #tpu.memory_space<vmem>>, vector<1x32x32xf32>,
    %c1_20 = arith.constant 1 : index
    %c0_21 = arith.constant 0 : index
    %c0_22 = arith.constant 0 : index
    %50 = vector.load %arg2[%c1_20, %c0_21, %c0_22] : memref<3x32x32xf32, #tpu.memory_space<vmem>>, vector<1x32x32xf32>
    %51 = vector.shape_cast %50 : vector<1x32x32xf32> to vector<32x32xf32>
    %52 = vector.shape_cast %17 : vector<32x32xf32> to vector<1x32x32xf32>
    tpu.vector_store %arg2[%c1_20, %c0_21, %c0_22], %52 {strides = array<i32>} : memref<3x32x32xf32, #tpu.memory_space<vmem>>, vector<1x32x32xf32>,
    %c2_23 = arith.constant 2 : index
    %c0_24 = arith.constant 0 : index
    %c0_25 = arith.constant 0 : index
    %53 = vector.load %arg2[%c2_23, %c0_24, %c0_25] : memref<3x32x32xf32, #tpu.memory_space<vmem>>, vector<1x32x32xf32>
    %54 = vector.shape_cast %53 : vector<1x32x32xf32> to vector<32x32xf32>
    %55 = vector.shape_cast %7 : vector<32x32xf32> to vector<1x32x32xf32>
    tpu.vector_store %arg2[%c2_23, %c0_24, %c0_25], %55 {strides = array<i32>} : memref<3x32x32xf32, #tpu.memory_space<vmem>>, vector<1x32x32xf32>,
    %cst_26 = arith.constant 2.990000e-01 : f32
    %56 = vector.broadcast %cst_26 : f32 to vector<32x32xf32>
    %57 = arith.mulf %56, %1 : vector<32x32xf32>
    %cst_27 = arith.constant 5.870000e-01 : f32
    %58 = vector.broadcast %cst_27 : f32 to vector<32x32xf32>
    %59 = arith.mulf %58, %3 : vector<32x32xf32>
    %60 = arith.addf %57, %59 : vector<32x32xf32>
    %cst_28 = arith.constant 1.140000e-01 : f32
    %61 = vector.broadcast %cst_28 : f32 to vector<32x32xf32>
    %62 = arith.mulf %61, %5 : vector<32x32xf32>
    %63 = arith.addf %60, %62 : vector<32x32xf32>
    %c0_29 = arith.constant 0 : index
    %c0_30 = arith.constant 0 : index
    %c0_31 = arith.constant 0 : index
    %64 = vector.load %arg3[%c0_29, %c0_30, %c0_31] : memref<1x32x32xf32, #tpu.memory_space<vmem>>, vector<1x32x32xf32>
    %65 = vector.shape_cast %64 : vector<1x32x32xf32> to vector<32x32xf32>
    %66 = vector.shape_cast %63 : vector<32x32xf32> to vector<1x32x32xf32>
    tpu.vector_store %arg3[%c0_29, %c0_30, %c0_31], %66 {strides = array<i32>} : memref<1x32x32xf32, #tpu.memory_space<vmem>>, vector<1x32x32xf32>,
    %67 = tpu.iota {dimensions = array<i32: 1>} : vector<32x32xi32>
    %68 = tpu.iota {dimensions = array<i32: 0>} : vector<32x32xi32>
    %c31_i32 = arith.constant 31 : i32
    %69 = tpu.dynamic_rotate %63 by %c31_i32 dim 1 : vector<32x32xf32>, i32 -> vector<32x32xf32>
    %70 = arith.subf %69, %63 : vector<32x32xf32>
    %c31_i32_32 = arith.constant 31 : i32
    %71 = vector.broadcast %c31_i32_32 : i32 to vector<32x32xi32>
    %72 = arith.cmpi eq, %67, %71 : vector<32x32xi32>
    %cst_33 = arith.constant 0.000000e+00 : f32
    %73 = vector.broadcast %cst_33 : f32 to vector<32x32xf32>
    %74 = arith.select %72, %73, %70 : vector<32x32xi1>, vector<32x32xf32>
    %c31_i32_34 = arith.constant 31 : i32
    %75 = tpu.dynamic_rotate %63 by %c31_i32_34 dim 0 : vector<32x32xf32>, i32 -> vector<32x32xf32>
    %76 = arith.subf %75, %63 : vector<32x32xf32>
    %c31_i32_35 = arith.constant 31 : i32
    %77 = vector.broadcast %c31_i32_35 : i32 to vector<32x32xi32>
    %78 = arith.cmpi eq, %68, %77 : vector<32x32xi32>
    %cst_36 = arith.constant 0.000000e+00 : f32
    %79 = vector.broadcast %cst_36 : f32 to vector<32x32xf32>
    %80 = arith.select %78, %79, %76 : vector<32x32xi1>, vector<32x32xf32>
    %81 = arith.mulf %74, %74 : vector<32x32xf32>
    %82 = arith.mulf %80, %80 : vector<32x32xf32>
    %83 = arith.addf %81, %82 : vector<32x32xf32>
    %84 = math.sqrt %83 : vector<32x32xf32>
    %cst_37 = arith.constant 5.000000e-02 : f32
    %85 = vector.broadcast %cst_37 : f32 to vector<32x32xf32>
    %86 = arith.cmpf ogt, %84, %85 : vector<32x32xf32>
    %87 = arith.extui %86 : vector<32x32xi1> to vector<32x32xi32>
    %88 = arith.sitofp %87 : vector<32x32xi32> to vector<32x32xf32>
    %c0_38 = arith.constant 0 : index
    %c0_39 = arith.constant 0 : index
    %c0_40 = arith.constant 0 : index
    %89 = vector.load %arg4[%c0_38, %c0_39, %c0_40] : memref<1x32x32xf32, #tpu.memory_space<vmem>>, vector<1x32x32xf32>
    %90 = vector.shape_cast %89 : vector<1x32x32xf32> to vector<32x32xf32>
    %91 = vector.shape_cast %88 : vector<32x32xf32> to vector<1x32x32xf32>
    tpu.vector_store %arg4[%c0_38, %c0_39, %c0_40], %91 {strides = array<i32>} : memref<1x32x32xf32, #tpu.memory_space<vmem>>, vector<1x32x32xf32>,
    return
  }
  func.func @transform_0(%arg0: i32) -> (i32, i32, i32) {
    %c0_i32 = arith.constant 0 : i32
    %c0_i32_0 = arith.constant 0 : i32
    %c0_i32_1 = arith.constant 0 : i32
    %c0_i32_2 = arith.constant 0 : i32
    return %c0_i32, %c0_i32_0, %c0_i32_1 : i32, i32, i32
  }
  func.func @transform_1(%arg0: i32) -> (i32, i32, i32) {
    %c0_i32 = arith.constant 0 : i32
    %c0_i32_0 = arith.constant 0 : i32
    %c0_i32_1 = arith.constant 0 : i32
    %c0_i32_2 = arith.constant 0 : i32
    return %c0_i32, %c0_i32_0, %c0_i32_1 : i32, i32, i32
  }
  func.func @transform_2(%arg0: i32) -> (i32, i32, i32) {
    %c0_i32 = arith.constant 0 : i32
    %c0_i32_0 = arith.constant 0 : i32
    %c0_i32_1 = arith.constant 0 : i32
    %c0_i32_2 = arith.constant 0 : i32
    return %c0_i32, %c0_i32_0, %c0_i32_1 : i32, i32, i32
  }
  func.func @transform_3(%arg0: i32) -> (i32, i32, i32) {
    %c0_i32 = arith.constant 0 : i32
    %c0_i32_0 = arith.constant 0 : i32
    %c0_i32_1 = arith.constant 0 : i32
    %c0_i32_2 = arith.constant 0 : i32
    return %c0_i32, %c0_i32_0, %c0_i32_1 : i32, i32, i32
  }
}

</mosaic_0001>

<llo_original>
// kernel: tpu_custom_call.1
$region0: #{tpu_custom_call.1}
  #allocation0 [shape = 'u32[]', space=smem, size = 0x4, offset = 0x4, fixed_abs, tag = 'smem constant byte address 0x4 - core index']
  #allocation1 [shape = 'u32[72,128]{1,0:T(1,128)}', space=vmem, size = 0x9000, scoped, tag = 'internal scratch']
  %s0 = inlined_call_operand.hbm [shape: f32[3,32,32], index: 0, kind: input, shape index: {}]
  %s1 = inlined_call_operand.hbm [shape: f32[3,32,32], index: 1, kind: output, shape index: {0}]
  %s2 = inlined_call_operand.hbm [shape: f32[1,32,32], index: 2, kind: output, shape index: {1}]
  %s3 = inlined_call_operand.hbm [shape: f32[1,32,32], index: 3, kind: output, shape index: {2}]
  %4 = xla_tuple %s1, %s2, %s3
  %s5 = sld [smem:[#allocation0]]
  $region34: #{tpu_custom_call.1} parent=0
    _
  %s7 = ssub.s32 1, %s5
  %s8 = scalar_select 0, %s7, %s5
  $region1: #{tpu_custom_call.1} parent=0
    #allocation2 [shape = 'u8[49152]{0}', space=vmem, size = 0xc000, scoped, tag = 'input window, operand 0, single buffered']
    #allocation3 [shape = 's32[1]{0}', space=sflag, size = 0x4, scoped, tag = 'scoped memory for tpu_custom_call.1']
    #allocation4 [shape = 's32[1]{0}', space=sflag, size = 0x4, scoped, tag = 'scoped memory for tpu_custom_call.1']
    #allocation5 [shape = 'u8[49152]{0}', space=vmem, size = 0xc000, scoped, tag = 'output window, operand 0, single buffered']
    #allocation6 [shape = 'u8[16384]{0}', space=vmem, size = 0x4000, scoped, tag = 'output window, operand 1, single buffered']
    #allocation7 [shape = 's32[1]{0}', space=sflag, size = 0x4, scoped, tag = 'scoped memory for tpu_custom_call.1']
    #allocation8 [shape = 'u8[16384]{0}', space=vmem, size = 0x4000, scoped, tag = 'output window, operand 2, single buffered']
    %9 = vsyncpa [#allocation3], 0
    %10 = vsyncpa [#allocation4], 0
    %11 = vsyncpa [#allocation7], 0
    // Predicated region
    $region2: #{tpu_custom_call.1} parent=1 // pred_check
      _
    $region3: #{tpu_custom_call.1} parent=1 // pred_check_branch
      %13 = sbr.rel (0) target = $region5
    $region4: #{tpu_custom_call.1} parent=1 // pred_region
      %15 = vsyncadd [#allocation3], 0
      %s16 = sshll.u32 %s0, 4
      %s17 = int_to_ptr.hbm [resolvable:$true] %s16
      %s18 = sshll.u32 [#allocation2], 4
      %s19 = int_to_ptr.vmem [resolvable:$true] %s18
      %24 = dma.hbm_to_vmem [thread:$0]  %s17, 1536, %s19, [#allocation3], 128, 128, 8
    $region5: #{tpu_custom_call.1} parent=1 // pred_fallthru
      _
    // Predicated region
    $region6: #{tpu_custom_call.1} parent=1 // pred_check
      _
    $region7: #{tpu_custom_call.1} parent=1 // pred_check_branch
      %26 = sbr.rel (0) target = $region9
    $region8: #{tpu_custom_call.1} parent=1 // pred_region
      %28 = dma.done [#allocation3], 1536
    $region9: #{tpu_custom_call.1} parent=1 // pred_fallthru
      _
    %v29 = vld [vmem:[#allocation2] sm:$0xff]
    %v30 = vld [vmem:[#allocation2 + $0x8] sm:$0xff]
    %v31 = vld [vmem:[#allocation2 + $0x10] sm:$0xff]
    %v32 = vld [vmem:[#allocation2 + $0x18] sm:$0xff]
    %s33 = scalar_lea.vmem [#allocation2], 32
    %v34 = vld [vmem:[%s33] sm:$0xff]
    %v35 = vld [vmem:[%s33 + $0x8] sm:$0xff]
    %v36 = vld [vmem:[%s33 + $0x10] sm:$0xff]
    %v37 = vld [vmem:[%s33 + $0x18] sm:$0xff]
    %s38 = scalar_lea.vmem [#allocation2], 64
    %v39 = vld [vmem:[%s38] sm:$0xff]
    %v40 = vld [vmem:[%s38 + $0x8] sm:$0xff]
    %v41 = vld [vmem:[%s38 + $0x10] sm:$0xff]
    %v42 = vld [vmem:[%s38 + $0x18] sm:$0xff]
    %v43 = vmax.f32 %v29, %v34
    %v44 = vmax.f32 %v30, %v35
    %v45 = vmax.f32 %v31, %v36
    %v46 = vmax.f32 %v32, %v37
    %v47 = vmax.f32 %v43, %v39
    %v48 = vmax.f32 %v44, %v40
    %v49 = vmax.f32 %v45, %v41
    %v50 = vmax.f32 %v46, %v42
    %v51 = vmin.f32 %v29, %v34
    %v52 = vmin.f32 %v30, %v35
    %v53 = vmin.f32 %v31, %v36
    %v54 = vmin.f32 %v32, %v37
    %v55 = vmin.f32 %v51, %v39
    %v56 = vmin.f32 %v52, %v40
    %v57 = vmin.f32 %v53, %v41
    %v58 = vmin.f32 %v54, %v42
    %v59 = vsub.f32 %v47, %v55
    %v60 = vsub.f32 %v48, %v56
    %v61 = vsub.f32 %v49, %v57
    %v62 = vsub.f32 %v50, %v58
    %vm63 = vcmp.gt.f32.partialorder %v47, 0.0
    %vm64 = vcmp.gt.f32.partialorder %v48, 0.0
    %vm65 = vcmp.gt.f32.partialorder %v49, 0.0
    %vm66 = vcmp.gt.f32.partialorder %v50, 0.0
    %v67 = vadd.f32 %v47, 1e-08
    %v68 = vadd.f32 %v48, 1e-08
    %v69 = vadd.f32 %v49, 1e-08
    %v70 = vadd.f32 %v50, 1e-08
    %v71 = vrcp.pop %v67
    %v72 = vmul.f32 %v67, %v71
    %v73 = vsub.f32 1.0, %v72
    %v74 = vmul.f32 %v71, %v73
    %v75 = vadd.f32 %v71, %v74
    %vm76 = vweird.f32 %v67
    %vm77 = vweird.f32 %v71
    %vm78 = vmor %vm76, %vm77
    %v79 = vsel %vm78, %v71, %v75
    %v80 = vand.u32 2147483647, %v67
    %vm81 = vcmp.eq.f32.partialorder %v80, 8.507059e+37
    %v82 = vand.u32 %v67, 2147483648
    %v83 = vor.u32 1.1754944e-38, %v82
    %v84 = vsel %vm81, %v83, %v79
    %v85 = vmul.f32 %v59, %v84
    %v86 = vrcp.pop %v68
    %v87 = vmul.f32 %v68, %v86
    %v88 = vsub.f32 1.0, %v87
    %v89 = vmul.f32 %v86, %v88
    %v90 = vadd.f32 %v86, %v89
    %vm91 = vweird.f32 %v68
    %vm92 = vweird.f32 %v86
    %vm93 = vmor %vm91, %vm92
    %v94 = vsel %vm93, %v86, %v90
    %v95 = vand.u32 2147483647, %v68
    %vm96 = vcmp.eq.f32.partialorder %v95, 8.507059e+37
    %v97 = vand.u32 %v68, 2147483648
    %v98 = vor.u32 1.1754944e-38, %v97
    %v99 = vsel %vm96, %v98, %v94
    %v100 = vmul.f32 %v60, %v99
    %v101 = vrcp.pop %v69
    %v102 = vmul.f32 %v69, %v101
    %v103 = vsub.f32 1.0, %v102
    %v104 = vmul.f32 %v101, %v103
    %v105 = vadd.f32 %v101, %v104
    %vm106 = vweird.f32 %v69
    %vm107 = vweird.f32 %v101
    %vm108 = vmor %vm106, %vm107
    %v109 = vsel %vm108, %v101, %v105
    %v110 = vand.u32 2147483647, %v69
    %vm111 = vcmp.eq.f32.partialorder %v110, 8.507059e+37
    %v112 = vand.u32 %v69, 2147483648
    %v113 = vor.u32 1.1754944e-38, %v112
    %v114 = vsel %vm111, %v113, %v109
    %v115 = vmul.f32 %v61, %v114
    %v116 = vrcp.pop %v70
    %v117 = vmul.f32 %v70, %v116
    %v118 = vsub.f32 1.0, %v117
    %v119 = vmul.f32 %v116, %v118
    %v120 = vadd.f32 %v116, %v119
    %vm121 = vweird.f32 %v70
    %vm122 = vweird.f32 %v116
    %vm123 = vmor %vm121, %vm122
    %v124 = vsel %vm123, %v116, %v120
    %v125 = vand.u32 2147483647, %v70
    %vm126 = vcmp.eq.f32.partialorder %v125, 8.507059e+37
    %v127 = vand.u32 %v70, 2147483648
    %v128 = vor.u32 1.1754944e-38, %v127
    %v129 = vsel %vm126, %v128, %v124
    %v130 = vmul.f32 %v62, %v129
    %v131 = vsel %vm63, %v85, 0.0
    %v132 = vsel %vm64, %v100, 0.0
    %v133 = vsel %vm65, %v115, 0.0
    %v134 = vsel %vm66, %v130, 0.0
    %vm135 = vcmp.gt.f32.partialorder %v59, 0.0
    %vm136 = vcmp.gt.f32.partialorder %v60, 0.0
    %vm137 = vcmp.gt.f32.partialorder %v61, 0.0
    %vm138 = vcmp.gt.f32.partialorder %v62, 0.0
    %v139 = vsel %vm135, %v59, 1.0
    %v140 = vsel %vm136, %v60, 1.0
    %v141 = vsel %vm137, %v61, 1.0
    %v142 = vsel %vm138, %v62, 1.0
    %v143 = vsub.f32 %v34, %v39
    %v144 = vsub.f32 %v35, %v40
    %v145 = vsub.f32 %v36, %v41
    %v146 = vsub.f32 %v37, %v42
    %v147 = vrcp.pop %v139
    %v148 = vmul.f32 %v139, %v147
    %v149 = vsub.f32 1.0, %v148
    %v150 = vmul.f32 %v147, %v149
    %v151 = vadd.f32 %v147, %v150
    %vm152 = vweird.f32 %v139
    %vm153 = vweird.f32 %v147
    %vm154 = vmor %vm152, %vm153
    %v155 = vsel %vm154, %v147, %v151
    %v156 = vand.u32 2147483647, %v139
    %vm157 = vcmp.eq.f32.partialorder %v156, 8.507059e+37
    %v158 = vand.u32 %v139, 2147483648
    %v159 = vor.u32 1.1754944e-38, %v158
    %v160 = vsel %vm157, %v159, %v155
    %v161 = vmul.f32 %v143, %v160
    %v162 = vrcp.pop %v140
    %v163 = vmul.f32 %v140, %v162
    %v164 = vsub.f32 1.0, %v163
    %v165 = vmul.f32 %v162, %v164
    %v166 = vadd.f32 %v162, %v165
    %vm167 = vweird.f32 %v140
    %vm168 = vweird.f32 %v162
    %vm169 = vmor %vm167, %vm168
    %v170 = vsel %vm169, %v162, %v166
    %v171 = vand.u32 2147483647, %v140
    %vm172 = vcmp.eq.f32.partialorder %v171, 8.507059e+37
    %v173 = vand.u32 %v140, 2147483648
    %v174 = vor.u32 1.1754944e-38, %v173
    %v175 = vsel %vm172, %v174, %v170
    %v176 = vmul.f32 %v144, %v175
    %v177 = vrcp.pop %v141
    %v178 = vmul.f32 %v141, %v177
    %v179 = vsub.f32 1.0, %v178
    %v180 = vmul.f32 %v177, %v179
    %v181 = vadd.f32 %v177, %v180
    %vm182 = vweird.f32 %v141
    %vm183 = vweird.f32 %v177
    %vm184 = vmor %vm182, %vm183
    %v185 = vsel %vm184, %v177, %v181
    %v186 = vand.u32 2147483647, %v141
    %vm187 = vcmp.eq.f32.partialorder %v186, 8.507059e+37
    %v188 = vand.u32 %v141, 2147483648
    %v189 = vor.u32 1.1754944e-38, %v188
    %v190 = vsel %vm187, %v189, %v185
    %v191 = vmul.f32 %v145, %v190
    %v192 = vrcp.pop %v142
    %v193 = vmul.f32 %v142, %v192
    %v194 = vsub.f32 1.0, %v193
    %v195 = vmul.f32 %v192, %v194
    %v196 = vadd.f32 %v192, %v195
    %vm197 = vweird.f32 %v142
    %vm198 = vweird.f32 %v192
    %vm199 = vmor %vm197, %vm198
    %v200 = vsel %vm199, %v192, %v196
    %v201 = vand.u32 2147483647, %v142
    %vm202 = vcmp.eq.f32.partialorder %v201, 8.507059e+37
    %v203 = vand.u32 %v142, 2147483648
    %v204 = vor.u32 1.1754944e-38, %v203
    %v205 = vsel %vm202, %v204, %v200
    %v206 = vmul.f32 %v146, %v205
    %vm207 = vcmp.lt.f32.partialorder %v161, 0.0
    %vm208 = vcmp.lt.f32.partialorder %v176, 0.0
    %vm209 = vcmp.lt.f32.partialorder %v191, 0.0
    %vm210 = vcmp.lt.f32.partialorder %v206, 0.0
    %v211 = vadd.f32 %v161, 6.0
    %v212 = vadd.f32 %v176, 6.0
    %v213 = vadd.f32 %v191, 6.0
    %v214 = vadd.f32 %v206, 6.0
    %v215 = vsel %vm207, %v211, %v161
    %v216 = vsel %vm208, %v212, %v176
    %v217 = vsel %vm209, %v213, %v191
    %v218 = vsel %vm210, %v214, %v206
    %v219 = vsub.f32 %v39, %v29
    %v220 = vsub.f32 %v40, %v30
    %v221 = vsub.f32 %v41, %v31
    %v222 = vsub.f32 %v42, %v32
    %v223 = vmul.f32 %v219, %v160
    %v224 = vmul.f32 %v220, %v175
    %v225 = vmul.f32 %v221, %v190
    %v226 = vmul.f32 %v222, %v205
    %v227 = vadd.f32 %v223, 2.0
    %v228 = vadd.f32 %v224, 2.0
    %v229 = vadd.f32 %v225, 2.0
    %v230 = vadd.f32 %v226, 2.0
    %v231 = vsub.f32 %v29, %v34
    %v232 = vsub.f32 %v30, %v35
    %v233 = vsub.f32 %v31, %v36
    %v234 = vsub.f32 %v32, %v37
    %v235 = vmul.f32 %v231, %v160
    %v236 = vmul.f32 %v232, %v175
    %v237 = vmul.f32 %v233, %v190
    %v238 = vmul.f32 %v234, %v205
    %v239 = vadd.f32 %v235, 4.0
    %v240 = vadd.f32 %v236, 4.0
    %v241 = vadd.f32 %v237, 4.0
    %v242 = vadd.f32 %v238, 4.0
    %vm243 = vcmp.eq.f32.partialorder %v47, %v29
    %vm244 = vcmp.eq.f32.partialorder %v48, %v30
    %vm245 = vcmp.eq.f32.partialorder %v49, %v31
    %vm246 = vcmp.eq.f32.partialorder %v50, %v32
    %vm247 = vcmp.eq.f32.partialorder %v47, %v34
    %vm248 = vcmp.eq.f32.partialorder %v48, %v35
    %vm249 = vcmp.eq.f32.partialorder %v49, %v36
    %vm250 = vcmp.eq.f32.partialorder %v50, %v37
    %v251 = vsel %vm247, %v227, %v239
    %v252 = vsel %vm248, %v228, %v240
    %v253 = vsel %vm249, %v229, %v241
    %v254 = vsel %vm250, %v230, %v242
    %v255 = vsel %vm243, %v215, %v251
    %v256 = vsel %vm244, %v216, %v252
    %v257 = vsel %vm245, %v217, %v253
    %v258 = vsel %vm246, %v218, %v254
    %v259 = vrcp.pop 6.0
    %v260 = vmul.f32 6.0, %v259
    %v261 = vsub.f32 1.0, %v260
    %v262 = vmul.f32 %v259, %v261
    %v263 = vadd.f32 %v259, %v262
    %vm264 = vweird.f32 %v259
    %v265 = vsel %vm264, %v259, %v263
    %v266 = vmul.f32 %v255, %v265
    %v267 = vmul.f32 %v256, %v265
    %v268 = vmul.f32 %v257, %v265
    %v269 = vmul.f32 %v258, %v265
    %v270 = vsel %vm135, %v266, 0.0
    %v271 = vsel %vm136, %v267, 0.0
    %v272 = vsel %vm137, %v268, 0.0
    %v273 = vsel %vm138, %v269, 0.0
    %vm274 = vcmask 261120
    %275 = vst.msk [vmem:[#allocation5] sm:$0xff] %vm274, %v270
    %276 = vst.msk [vmem:[#allocation5 + $0x8] sm:$0xff] %vm274, %v271
    %277 = vst.msk [vmem:[#allocation5 + $0x10] sm:$0xff] %vm274, %v272
    %278 = vst.msk [vmem:[#allocation5 + $0x18] sm:$0xff] %vm274, %v273
    %s279 = scalar_lea.vmem [#allocation5], 32
    %280 = vst.msk [vmem:[%s279] sm:$0xff] %vm274, %v131
    %281 = vst.msk [vmem:[%s279 + $0x8] sm:$0xff] %vm274, %v132
    %282 = vst.msk [vmem:[%s279 + $0x10] sm:$0xff] %vm274, %v133
    %283 = vst.msk [vmem:[%s279 + $0x18] sm:$0xff] %vm274, %v134
    %s284 = scalar_lea.vmem [#allocation5], 64
    %285 = vst.msk [vmem:[%s284] sm:$0xff] %vm274, %v47
    %286 = vst.msk [vmem:[%s284 + $0x8] sm:$0xff] %vm274, %v48
    %287 = vst.msk [vmem:[%s284 + $0x10] sm:$0xff] %vm274, %v49
    %288 = vst.msk [vmem:[%s284 + $0x18] sm:$0xff] %vm274, %v50
    %v289 = vmul.f32 %v29, 0.299
    %v290 = vmul.f32 %v30, 0.299
    %v291 = vmul.f32 %v31, 0.299
    %v292 = vmul.f32 %v32, 0.299
    %v293 = vmul.f32 %v34, 0.587
    %v294 = vmul.f32 %v35, 0.587
    %v295 = vmul.f32 %v36, 0.587
    %v296 = vmul.f32 %v37, 0.587
    %v297 = vadd.f32 %v289, %v293
    %v298 = vadd.f32 %v290, %v294
    %v299 = vadd.f32 %v291, %v295
    %v300 = vadd.f32 %v292, %v296
    %v301 = vmul.f32 %v39, 0.114
    %v302 = vmul.f32 %v40, 0.114
    %v303 = vmul.f32 %v41, 0.114
    %v304 = vmul.f32 %v42, 0.114
    %v305 = vadd.f32 %v297, %v301
    %v306 = vadd.f32 %v298, %v302
    %v307 = vadd.f32 %v299, %v303
    %v308 = vadd.f32 %v300, %v304
    %309 = vst.msk [vmem:[#allocation6] sm:$0xff] %vm274, %v305
    %310 = vst.msk [vmem:[#allocation6 + $0x8] sm:$0xff] %vm274, %v306
    %311 = vst.msk [vmem:[#allocation6 + $0x10] sm:$0xff] %vm274, %v307
    %312 = vst.msk [vmem:[#allocation6 + $0x18] sm:$0xff] %vm274, %v308
    %v313 = vlaneseq
    %v314 = vand.u32 %v313, 127
    %v315 = vlaneseq
    %v316 = vshrl.u32 %v315, 7
    %v317 = vadd.s32 %v316, 8
    %v318 = vadd.s32 %v316, 16
    %v319 = vadd.s32 %v316, 24
    %vm320 = vcmask 1047808
    %321 = vrot.lane.b32.xlu0 %v305, 32
    %v322 = vpop.permute.xlu0 %321
    %v323 = vsel %vm320, %v322, %v305
    %324 = vrot.lane.b32.xlu0 %v306, 32
    %v325 = vpop.permute.xlu0 %324
    %v326 = vsel %vm320, %v325, %v306
    %327 = vrot.lane.b32.xlu0 %v307, 32
    %v328 = vpop.permute.xlu0 %327
    %v329 = vsel %vm320, %v328, %v307
    %330 = vrot.lane.b32.xlu0 %v308, 32
    %v331 = vpop.permute.xlu0 %330
    %v332 = vsel %vm320, %v331, %v308
    %333 = vrot.lane.b32.xlu0 %v323, 32
    %v334 = vpop.permute.xlu0 %333
    %335 = vrot.lane.b32.xlu0 %v326, 32
    %v336 = vpop.permute.xlu0 %335
    %337 = vrot.lane.b32.xlu0 %v329, 32
    %v338 = vpop.permute.xlu0 %337
    %339 = vrot.lane.b32.xlu0 %v332, 32
    %v340 = vpop.permute.xlu0 %339
    %v341 = vsel %vm320, %v334, %v305
    %v342 = vsel %vm320, %v336, %v306
    %v343 = vsel %vm320, %v338, %v307
    %v344 = vsel %vm320, %v340, %v308
    %349 = vrot.lane.b32.xlu0 %v305, 1
    %v350 = vpop.permute.xlu0 %349
    %351 = vrot.lane.b32.xlu0 %v306, 1
    %v352 = vpop.permute.xlu0 %351
    %353 = vrot.lane.b32.xlu0 %v307, 1
    %v354 = vpop.permute.xlu0 %353
    %355 = vrot.lane.b32.xlu0 %v308, 1
    %v356 = vpop.permute.xlu0 %355
    %v361 = vsub.f32 %v341, %v350
    %v362 = vsub.f32 %v342, %v352
    %v363 = vsub.f32 %v343, %v354
    %v364 = vsub.f32 %v344, %v356
    %vm365 = vcmp.eq.s32.totalorder %v314, 31
    %370 = vrot.lane.b32.xlu0 %v361, 127
    %v371 = vpop.permute.xlu0 %370
    %372 = vrot.lane.b32.xlu0 %v362, 127
    %v373 = vpop.permute.xlu0 %372
    %374 = vrot.lane.b32.xlu0 %v363, 127
    %v375 = vpop.permute.xlu0 %374
    %376 = vrot.lane.b32.xlu0 %v364, 127
    %v377 = vpop.permute.xlu0 %376
    %v382 = vsel %vm365, 0.0, %v371
    %v383 = vsel %vm365, 0.0, %v373
    %v384 = vsel %vm365, 0.0, %v375
    %v385 = vsel %vm365, 0.0, %v377
    %v386 = vrot.slane %v305, 1
    %v387 = vrot.slane %v306, 1
    %v388 = vrot.slane %v307, 1
    %v389 = vrot.slane %v308, 1
    %vm390 = vcmp.lt.s32.totalorder %v316, 7
    %v391 = vsel %vm390, %v388, %v389
    %v392 = vsel %vm390, %v387, %v388
    %v393 = vsel %vm390, %v386, %v387
    %v394 = vsel %vm390, %v389, %v386
    %v395 = vsub.f32 %v393, %v305
    %v396 = vsub.f32 %v392, %v306
    %v397 = vsub.f32 %v391, %v307
    %v398 = vsub.f32 %v394, %v308
    %vm399 = vcmp.eq.s32.totalorder %v316, 31
    %vm400 = vcmp.eq.s32.totalorder %v317, 31
    %vm401 = vcmp.eq.s32.totalorder %v318, 31
    %vm402 = vcmp.eq.s32.totalorder %v319, 31
    %v403 = vsel %vm399, 0.0, %v395
    %v404 = vsel %vm400, 0.0, %v396
    %v405 = vsel %vm401, 0.0, %v397
    %v406 = vsel %vm402, 0.0, %v398
    %v407 = vmul.f32 %v382, %v382
    %v408 = vmul.f32 %v383, %v383
    %v409 = vmul.f32 %v384, %v384
    %v410 = vmul.f32 %v385, %v385
    %v411 = vmul.f32 %v403, %v403
    %v412 = vmul.f32 %v404, %v404
    %v413 = vmul.f32 %v405, %v405
    %v414 = vmul.f32 %v406, %v406
    %v415 = vadd.f32 %v407, %v411
    %v416 = vadd.f32 %v408, %v412
    %v417 = vadd.f32 %v409, %v413
    %v418 = vadd.f32 %v410, %v414
    %v419 = vrsqrt.pop %v415
    %v420 = vmul.f32 %v419, %v415
    %v421 = vmul.f32 %v420, %v419
    %v422 = vmul.f32 0.5, %v421
    %v423 = vsub.f32 1.5, %v422
    %v424 = vmul.f32 %v419, %v423
    %v425 = vmul.f32 %v415, %v424
    %vm426 = vcmp.eq.f32.partialorder %v415, inf
    %v427 = vsel %vm426, %v415, %v425
    %vm428 = vcmp.eq.f32.partialorder %v415, 0.0
    %v429 = vand.u32 %v415, 2147483648
    %v430 = vsel %vm428, %v429, %v427
    %v431 = vrsqrt.pop %v416
    %v432 = vmul.f32 %v431, %v416
    %v433 = vmul.f32 %v432, %v431
    %v434 = vmul.f32 0.5, %v433
    %v435 = vsub.f32 1.5, %v434
    %v436 = vmul.f32 %v431, %v435
    %v437 = vmul.f32 %v416, %v436
    %vm438 = vcmp.eq.f32.partialorder %v416, inf
    %v439 = vsel %vm438, %v416, %v437
    %vm440 = vcmp.eq.f32.partialorder %v416, 0.0
    %v441 = vand.u32 %v416, 2147483648
    %v442 = vsel %vm440, %v441, %v439
    %v443 = vrsqrt.pop %v417
    %v444 = vmul.f32 %v443, %v417
    %v445 = vmul.f32 %v444, %v443
    %v446 = vmul.f32 0.5, %v445
    %v447 = vsub.f32 1.5, %v446
    %v448 = vmul.f32 %v443, %v447
    %v449 = vmul.f32 %v417, %v448
    %vm450 = vcmp.eq.f32.partialorder %v417, inf
    %v451 = vsel %vm450, %v417, %v449
    %vm452 = vcmp.eq.f32.partialorder %v417, 0.0
    %v453 = vand.u32 %v417, 2147483648
    %v454 = vsel %vm452, %v453, %v451
    %v455 = vrsqrt.pop %v418
    %v456 = vmul.f32 %v455, %v418
    %v457 = vmul.f32 %v456, %v455
    %v458 = vmul.f32 0.5, %v457
    %v459 = vsub.f32 1.5, %v458
    %v460 = vmul.f32 %v455, %v459
    %v461 = vmul.f32 %v418, %v460
    %vm462 = vcmp.eq.f32.partialorder %v418, inf
    %v463 = vsel %vm462, %v418, %v461
    %vm464 = vcmp.eq.f32.partialorder %v418, 0.0
    %v465 = vand.u32 %v418, 2147483648
    %v466 = vsel %vm464, %v465, %v463
    %vm467 = vcmp.gt.f32.partialorder %v430, 0.05
    %vm468 = vcmp.gt.f32.partialorder %v442, 0.05
    %vm469 = vcmp.gt.f32.partialorder %v454, 0.05
    %vm470 = vcmp.gt.f32.partialorder %v466, 0.05
    %v471 = vsel %vm467, 1, 0
    %v472 = vsel %vm468, 1, 0
    %v473 = vsel %vm469, 1, 0
    %v474 = vsel %vm470, 1, 0
    %v475 = vcvt.s32.f32 %v471
    %v476 = vcvt.s32.f32 %v472
    %v477 = vcvt.s32.f32 %v473
    %v478 = vcvt.s32.f32 %v474
    %479 = vst.msk [vmem:[#allocation8] sm:$0xff] %vm274, %v475
    %480 = vst.msk [vmem:[#allocation8 + $0x8] sm:$0xff] %vm274, %v476
    %481 = vst.msk [vmem:[#allocation8 + $0x10] sm:$0xff] %vm274, %v477
    %482 = vst.msk [vmem:[#allocation8 + $0x18] sm:$0xff] %vm274, %v478
    // Predicated region
    $region10: #{tpu_custom_call.1} parent=1 // pred_check
      _
    $region11: #{tpu_custom_call.1} parent=1 // pred_check_branch
      %484 = sbr.rel (0) target = $region13
    $region12: #{tpu_custom_call.1} parent=1 // pred_region
      %486 = vsyncadd [#allocation4], 0
      %s487 = sshll.u32 [#allocation5], 4
      %s488 = int_to_ptr.vmem [resolvable:$true] %s487
      %s489 = sshll.u32 %s1, 4
      %s490 = int_to_ptr.hbm [resolvable:$true] %s489
      %495 = dma.vmem_to_hbm [thread:$0]  %s488, 1536, %s490, [#allocation4], 128, 128, 8
    $region13: #{tpu_custom_call.1} parent=1 // pred_fallthru
      _
    // Predicated region
    $region14: #{tpu_custom_call.1} parent=1 // pred_check
      _
    $region15: #{tpu_custom_call.1} parent=1 // pred_check_branch
      %497 = sbr.rel (0) target = $region17
    $region16: #{tpu_custom_call.1} parent=1 // pred_region
      %499 = vsyncadd [#allocation7], 0
      %s500 = sshll.u32 [#allocation6], 4
      %s501 = int_to_ptr.vmem [resolvable:$true] %s500
      %s502 = sshll.u32 %s2, 4
      %s503 = int_to_ptr.hbm [resolvable:$true] %s502
      %508 = dma.vmem_to_hbm [thread:$0]  %s501, 512, %s503, [#allocation7], 128, 128, 8
    $region17: #{tpu_custom_call.1} parent=1 // pred_fallthru
      _
    // Predicated region
    $region18: #{tpu_custom_call.1} parent=1 // pred_check
      _
    $region19: #{tpu_custom_call.1} parent=1 // pred_check_branch
      %510 = sbr.rel (0) target = $region21
    $region20: #{tpu_custom_call.1} parent=1 // pred_region
      %512 = vsyncadd [#allocation7], 0
      %s513 = sshll.u32 [#allocation8], 4
      %s514 = int_to_ptr.vmem [resolvable:$true] %s513
      %s515 = sshll.u32 %s3, 4
      %s516 = int_to_ptr.hbm [resolvable:$true] %s515
      %521 = dma.vmem_to_hbm [thread:$0]  %s514, 512, %s516, [#allocation7], 128, 128, 8
    $region21: #{tpu_custom_call.1} parent=1 // pred_fallthru
      _
    // Predicated region
    $region22: #{tpu_custom_call.1} parent=1 // pred_check
      _
    $region23: #{tpu_custom_call.1} parent=1 // pred_check_branch
      %523 = sbr.rel (0) target = $region25
    $region24: #{tpu_custom_call.1} parent=1 // pred_region
      %525 = dma.done [#allocation4], 1536
    $region25: #{tpu_custom_call.1} parent=1 // pred_fallthru
      _
    // Predicated region
    $region26: #{tpu_custom_call.1} parent=1 // pred_check
      _
    $region27: #{tpu_custom_call.1} parent=1 // pred_check_branch
      %527 = sbr.rel (0) target = $region29
    $region28: #{tpu_custom_call.1} parent=1 // pred_region
      %529 = dma.done [#allocation7], 512
    $region29: #{tpu_custom_call.1} parent=1 // pred_fallthru
      _
    // Predicated region
    $region30: #{tpu_custom_call.1} parent=1 // pred_check
      _
    $region31: #{tpu_custom_call.1} parent=1 // pred_check_branch
      %531 = sbr.rel (0) target = $region33
    $region32: #{tpu_custom_call.1} parent=1 // pred_region
      %533 = dma.done [#allocation7], 512
    $region33: #{tpu_custom_call.1} parent=1 // pred_fallthru
      _
    %534 = vsyncpa [#allocation3], 1
    %535 = vsyncpa [#allocation4], 1
    %536 = vsyncpa [#allocation7], 1

</llo_original>
